<compile_context>
chip_gen: v6e
topology: v6e:2x2x1
jax: 0.10.0
libtpu: 0.0.40
codegen_flags: <defaults>
</compile_context>

<pallas_src>
import functools

import numpy as np
import jax
import jax.numpy as jnp
from jax.experimental import pallas as pl
from jax.experimental.pallas import tpu as pltpu

EPS = 1e-5  # InstanceNorm1d default eps


# ----------------------------------------------------------------------------
# In-kernel math helpers
# ----------------------------------------------------------------------------
def _gelu_tanh(x):
    # tanh-approximate GELU; tanh lands on the EUP slot, epilogue is VALU-light.
    c = 0.7978845608028654  # sqrt(2/pi)
    return 0.5 * x * (1.0 + jnp.tanh(c * (x + 0.044715 * (x * x * x))))


def _instance_norm_rows(y, inv_l):
    # One-pass InstanceNorm1d (affine=False) over the lane axis of (C, L):
    # two independent XLU reductions instead of two serially dependent ones.
    s = jnp.sum(y, axis=1, keepdims=True)
    ss = jnp.sum(y * y, axis=1, keepdims=True)
    mean = s * inv_l
    var = ss * inv_l - mean * mean
    return (y - mean) * jax.lax.rsqrt(var + EPS)


# ----------------------------------------------------------------------------
# Fused decoder-stage Pallas kernel
# ----------------------------------------------------------------------------
def _fused_stage_kernel(x_ref, u_ref, skip_ref, wup_ref, wx_ref, ws_ref, o_ref,
                        *, ksize, l_out):
    """One full decoder stage for one batch element, entirely in VMEM.

    x_ref:    (1, C_in, L_in)     coarse input
    u_ref:    (L_in, L_out+K-1)   fused linear-upsample + replicate-pad matrix
    skip_ref: (1, C_out, L_out)   skip connection
    wup_ref:  (C_out, K*C_in)     tap-fused (im2col) dense grouped-conv weight
    wx_ref:   (C_out, C_out)      1x1 cat-conv weight, activation half
    ws_ref:   (C_out, C_out)      1x1 cat-conv weight, skip half
    o_ref:    (1, C_out, L_out)   stage output
    """
    inv_l = 1.0 / l_out
    x = x_ref[0]                                       # (C_in, L_in)

    # (1) linear 2x/3x upsample + replicate 'same' pad as ONE MXU matmul.
    xpad = jnp.dot(x, u_ref[...],
                   preferred_element_type=jnp.float32)  # (C_in, L_out+K-1)

    # (2) grouped conv as a single tap-fused matmul: stack the K lane-shifted
    #     views along the channel (sublane) axis -> contraction depth K*C_in.
    if ksize == 1:
        cols = xpad
    else:
        cols = jnp.concatenate(
            [xpad[:, t:t + l_out] for t in range(ksize)], axis=0)
    y = jnp.dot(wup_ref[...], cols,
                preferred_element_type=jnp.float32)     # (C_out, L_out)

    # (3) InstanceNorm1d + GELU.
    y = _gelu_tanh(_instance_norm_rows(y, inv_l))

    # (4) [y ; skip] channel-concat 1x1 conv (weight pre-split -> no concat),
    #     then InstanceNorm1d + GELU.
    y2 = (jnp.dot(wx_ref[...], y, preferred_element_type=jnp.float32) +
          jnp.dot(ws_ref[...], skip_ref[0], preferred_element_type=jnp.float32))
    o_ref[0] = _gelu_tanh(_instance_norm_rows(y2, inv_l))


def fused_stage(x, u_mat, skip, w_up, wx, ws, *, ksize, l_out):
    B, c_in, l_in = x.shape
    c_out = skip.shape[1]
    lp = l_out + ksize - 1
    kernel = functools.partial(_fused_stage_kernel, ksize=ksize, l_out=l_out)
    return pl.pallas_call(
        kernel,
        out_shape=jax.ShapeDtypeStruct((B, c_out, l_out), jnp.float32),
        grid=(B,),
        in_specs=[
            pl.BlockSpec((1, c_in, l_in), lambda b: (b, 0, 0)),
            pl.BlockSpec((l_in, lp), lambda b: (0, 0)),
            pl.BlockSpec((1, c_out, l_out), lambda b: (b, 0, 0)),
            pl.BlockSpec((c_out, ksize * c_in), lambda b: (0, 0)),
            pl.BlockSpec((c_out, c_out), lambda b: (0, 0)),
            pl.BlockSpec((c_out, c_out), lambda b: (0, 0)),
        ],
        out_specs=pl.BlockSpec((1, c_out, l_out), lambda b: (b, 0, 0)),
        compiler_params=pltpu.CompilerParams(
            dimension_semantics=("parallel",)),
    )(x, u_mat, skip, w_up, wx, ws)


# ----------------------------------------------------------------------------
# Host-side (numpy, cached) fused upsample + replicate-pad matrix
#   torch.nn.functional.interpolate(mode='linear', align_corners=False)
#   composed with the Conv1d 'same' replicate padding, as a single linear map
#   along the length axis:  xpad = x @ U,  U: (L_in, L_out + K - 1)
# ----------------------------------------------------------------------------
@functools.lru_cache(maxsize=None)
def _upsample_pad_matrix(l_in, method, ksize, use_3f):
    if use_3f:
        out_full = 3 * l_in
        trim_l, trim_r = 0, 0
    else:
        if method not in (0, 1, 2):
            raise ValueError("downsampling method not supported")
        out_full = 2 * l_in
        trim_l, trim_r = {0: (0, 0), 1: (1, 0), 2: (0, 1)}[method]

    j = np.arange(out_full, dtype=np.float64)
    src = np.maximum((j + 0.5) * (l_in / out_full) - 0.5, 0.0)
    i0 = np.clip(np.floor(src).astype(np.int64), 0, l_in - 1)
    i1 = np.minimum(i0 + 1, l_in - 1)
    frac = src - i0
    u = np.zeros((l_in, out_full), np.float64)
    np.add.at(u, (i0, np.arange(out_full)), 1.0 - frac)
    np.add.at(u, (i1, np.arange(out_full)), frac)
    u = u[:, trim_l:out_full - trim_r]
    l_out = u.shape[1]

    total = ksize - 1
    lpad = total // 2
    cols = np.clip(np.arange(l_out + total) - lpad, 0, l_out - 1)
    u_pad = u[:, cols].astype(np.float32)
    return jnp.asarray(u_pad), l_out


# ----------------------------------------------------------------------------
# UnetHead module (parameters + forward orchestration)
# ----------------------------------------------------------------------------
class UnetHeadPallas:
    def __init__(self, pyramid_height, hidden_channels, kernel_size,
                 use_batch_norm, dropout, initial_downsample_3f, key):
        assert isinstance(hidden_channels, list)
        for c in hidden_channels:
            assert isinstance(c, int)
        # TODO(synk): BatchNorm1d branch not implemented; module is instantiated
        #             with use_batch_norm=False (InstanceNorm1d path).
        assert not use_batch_norm
        # TODO(synk): Dropout1d not implemented; module is instantiated with dropout=0.0.
        assert dropout == 0.0

        self.pyramid_height = pyramid_height
        self.initial_downsample_3f = initial_downsample_3f
        self.up_w = []          # grouped weights (C_out, C_in//G, K)  (reference)
        self.up_w_im2col = []   # (C_out, K*C_in) dense tap-fused kernel weights
        self.up_ks = []
        self.up_groups = []
        self.cat_w = []         # (C_out, 2*C_out) 1x1-conv weights (reference)
        self.cat_wx = []        # (C_out, C_out) precomputed split, activation half
        self.cat_ws = []        # (C_out, C_out) precomputed split, skip half

        for k in range(pyramid_height - 1):
            key, k1, k2 = jax.random.split(key, 3)
            c_out, c_in = hidden_channels[k], hidden_channels[k + 1]
            if c_out % 4 == 0:
                groups, ks = c_out // 4, kernel_size
            else:
                groups, ks = 1, 1
            fan_in = (c_in // groups) * ks
            w = jax.random.uniform(k1, (c_out, c_in // groups, ks),
                                   jnp.float32, -1.0, 1.0) / np.sqrt(fan_in)
            self.up_w.append(w)
            self.up_ks.append(ks)
            self.up_groups.append(groups)

            # Dense block-diagonal weight, reordered for the im2col matmul:
            #   W2[co, t*C_in + ci] = W_dense[co, ci, t]   (hoisted to init).
            # TODO(synk): at large channel counts loop over groups in-kernel
            #             instead of densifying (MXU multiplies zeros otherwise).
            wn = np.asarray(w)
            cog, cig = c_out // groups, c_in // groups
            dense = np.zeros((c_out, c_in, ks), np.float32)
            for g in range(groups):
                dense[g * cog:(g + 1) * cog,
                      g * cig:(g + 1) * cig, :] = wn[g * cog:(g + 1) * cog]
            self.up_w_im2col.append(
                jnp.asarray(dense.transpose(0, 2, 1).reshape(c_out, ks * c_in)))

            wc = jax.random.uniform(k2, (c_out, 2 * c_out),
                                    jnp.float32, -1.0, 1.0) / np.sqrt(2 * c_out)
            self.cat_w.append(wc)
            self.cat_wx.append(wc[:, :c_out])
            self.cat_ws.append(wc[:, c_out:])

    def __call__(self, ret, downsampling_methods):
        H = self.pyramid_height
        x = ret[-1]
        for i in range(H - 1):
            k = H - 2 - i  # list index corresponding to -(i + 1)
            use_3f = (i == H - 2 and self.initial_downsample_3f)
            method = None if use_3f else int(downsampling_methods[-(i + 1)])
            u_mat, l_out = _upsample_pad_matrix(
                int(x.shape[-1]), method, self.up_ks[k], use_3f)
            skip = ret[-(i + 2)]
            c_out = self.up_w_im2col[k].shape[0]
            assert skip.shape == (x.shape[0], c_out, l_out)
            x = fused_stage(x, u_mat, skip, self.up_w_im2col[k],
                            self.cat_wx[k], self.cat_ws[k],
                            ksize=self.up_ks[k], l_out=l_out)
        return x


# ----------------------------------------------------------------------------
# Independent pure-JAX reference (XLA conv / exact GELU) for validation
# ----------------------------------------------------------------------------
def _linear_upsample(x, out_len):
    B, C, L = x.shape
    j = jnp.arange(out_len, dtype=jnp.float32)
    src = (j + 0.5) * (L / out_len) - 0.5
    src = jnp.maximum(src, 0.0)
    i0 = jnp.clip(jnp.floor(src).astype(jnp.int32), 0, L - 1)
    i1 = jnp.clip(i0 + 1, 0, L - 1)
    frac = src - i0.astype(jnp.float32)
    x0 = jnp.take(x, i0, axis=2)
    x1 = jnp.take(x, i1, axis=2)
    return x0 * (1.0 - frac) + x1 * frac


def _upsample_ref(x, method):
    if method == 0:
        return _linear_upsample(x, x.shape[-1] * 2)
    elif method == 1:
        return _linear_upsample(x, x.shape[-1] * 2)[..., 1:]
    elif method == 2:
        return _linear_upsample(x, x.shape[-1] * 2)[..., :-1]
    raise ValueError("downsampling method not supported")


def _replicate_pad_same(x, ksize):
    total = ksize - 1
    if total == 0:
        return x
    lp = total // 2
    rp = total - lp
    return jnp.pad(x, ((0, 0), (0, 0), (lp, rp)), mode="edge")


def _instance_norm_ref(y):
    mean = jnp.mean(y, axis=2, keepdims=True)
    var = jnp.mean(jnp.square(y - mean), axis=2, keepdims=True)
    return (y - mean) * jax.lax.rsqrt(var + EPS)


def _ref_forward(head, ret, downsampling_methods):
    H = head.pyramid_height
    x = ret[-1]
    for i in range(H - 1):
        k = H - 2 - i
        if i == H - 2 and head.initial_downsample_3f:
            xu = _linear_upsample(x, x.shape[-1] * 3)
        else:
            xu = _upsample_ref(x, downsampling_methods[-(i + 1)])
        xpad = _replicate_pad_same(xu, head.up_ks[k])
        y = jax.lax.conv_general_dilated(
            xpad, head.up_w[k], window_strides=(1,), padding="VALID",
            dimension_numbers=("NCH", "OIH", "NCH"),
            feature_group_count=head.up_groups[k],
            precision=jax.lax.Precision.HIGHEST)
        y = jax.nn.gelu(_instance_norm_ref(y), approximate=False)
        skip = ret[-(i + 2)]
        xin = jnp.concatenate([y, skip], axis=1)
        y = jax.lax.conv_general_dilated(
            xin, head.cat_w[k][:, :, None], window_strides=(1,), padding="VALID",
            dimension_numbers=("NCH", "OIH", "NCH"),
            precision=jax.lax.Precision.HIGHEST)
        x = jax.nn.gelu(_instance_norm_ref(y), approximate=False)
    return x


# ----------------------------------------------------------------------------
if __name__ == "__main__":
    pyramid_height = 3
    hidden_channels = [8, 16, 32]   # finest -> coarsest
    kernel_size = 3
    B, L_coarse = 2, 8              # coarsest sequence length

    key = jax.random.PRNGKey(0)
    key, kparams = jax.random.split(key)
    head = UnetHeadPallas(pyramid_height, hidden_channels, kernel_size,
                          use_batch_norm=False, dropout=0.0,
                          initial_downsample_3f=False, key=kparams)

    # ret[lvl]: (B, hidden_channels[lvl], L_coarse * 2**(H-1-lvl))
    ret = []
    for lvl in range(pyramid_height):
        key, kx = jax.random.split(key)
        L = L_coarse * (2 ** (pyramid_height - 1 - lvl))
        ret.append(jax.random.normal(kx, (B, hidden_channels[lvl], L),
                                     jnp.float32))
    downsampling_methods = [0] * pyramid_height

    out = jax.block_until_ready(head(ret, downsampling_methods))
    assert out.shape == (B, hidden_channels[0],
                         L_coarse * 2 ** (pyramid_height - 1))
    assert bool(jnp.all(jnp.isfinite(out)))

    ref = jax.block_until_ready(_ref_forward(head, ret, downsampling_methods))
    np.testing.assert_allclose(np.asarray(out), np.asarray(ref),
                               rtol=1e-2, atol=1e-2)
    print("KERNEL_OK")
</pallas_src>

<mosaic_0001>
module attributes {stable_mosaic.version = 11 : i64} {
  func.func @_fused_stage_kernel(%arg0: i32, %arg1: memref<1x32x8xf32, #tpu.memory_space<vmem>>, %arg2: memref<8x18xf32, #tpu.memory_space<vmem>>, %arg3: memref<1x16x16xf32, #tpu.memory_space<vmem>>, %arg4: memref<16x96xf32, #tpu.memory_space<vmem>>, %arg5: memref<16x16xf32, #tpu.memory_space<vmem>>, %arg6: memref<16x16xf32, #tpu.memory_space<vmem>>, %arg7: memref<1x16x16xf32, #tpu.memory_space<vmem>>) attributes {dimension_semantics = [#tpu.dimension_semantics<parallel>], iteration_bounds = array<i64: 2>, scalar_prefetch = 0 : i64, scratch_operands = 0 : i64, tpu.core_type = #tpu.core_type<tc>, window_params = [{transform_indices = @transform_0, window_bounds = array<i64: 1, 32, 8>}, {pipeline_mode = #tpu.pipeline_mode<synchronous>, transform_indices = @transform_1, window_bounds = array<i64: 8, 18>}, {transform_indices = @transform_2, window_bounds = array<i64: 1, 16, 16>}, {pipeline_mode = #tpu.pipeline_mode<synchronous>, transform_indices = @transform_3, window_bounds = array<i64: 16, 96>}, {pipeline_mode = #tpu.pipeline_mode<synchronous>, transform_indices = @transform_4, window_bounds = array<i64: 16, 16>}, {pipeline_mode = #tpu.pipeline_mode<synchronous>, transform_indices = @transform_5, window_bounds = array<i64: 16, 16>}, {transform_indices = @transform_6, window_bounds = array<i64: 1, 16, 16>}]} {
    %c0 = arith.constant 0 : index
    %c0_0 = arith.constant 0 : index
    %c0_1 = arith.constant 0 : index
    %0 = vector.load %arg1[%c0, %c0_0, %c0_1] : memref<1x32x8xf32, #tpu.memory_space<vmem>>, vector<1x32x8xf32>
    %1 = vector.shape_cast %0 : vector<1x32x8xf32> to vector<32x8xf32>
    %c0_2 = arith.constant 0 : index
    %c0_3 = arith.constant 0 : index
    %2 = vector.load %arg2[%c0_2, %c0_3] : memref<8x18xf32, #tpu.memory_space<vmem>>, vector<8x18xf32>
    %cst = arith.constant dense<0.000000e+00> : vector<32x18xf32>
    %3 = tpu.matmul %1, %2, %cst {dimension_numbers = #tpu.dot_dimension_numbers<[1], [0], [0], [1], [0, 0, 1, 1], [], []>} : vector<32x8xf32>, vector<8x18xf32>, vector<32x18xf32> -> vector<32x18xf32>
    %4 = vector.extract_strided_slice %3 {offsets = [0, 0], sizes = [32, 16], strides = [1, 1]} : vector<32x18xf32> to vector<32x16xf32>
    %5 = vector.extract_strided_slice %3 {offsets = [0, 1], sizes = [32, 16], strides = [1, 1]} : vector<32x18xf32> to vector<32x16xf32>
    %6 = vector.extract_strided_slice %3 {offsets = [0, 2], sizes = [32, 16], strides = [1, 1]} : vector<32x18xf32> to vector<32x16xf32>
    %7 = tpu.concatenate %4, %5, %6 in 0 : vector<32x16xf32>, vector<32x16xf32>, vector<32x16xf32> -> vector<96x16xf32>
    %c0_4 = arith.constant 0 : index
    %c0_5 = arith.constant 0 : index
    %8 = vector.load %arg4[%c0_4, %c0_5] : memref<16x96xf32, #tpu.memory_space<vmem>>, vector<16x96xf32>
    %cst_6 = arith.constant dense<0.000000e+00> : vector<16x16xf32>
    %9 = tpu.matmul %8, %7, %cst_6 {dimension_numbers = #tpu.dot_dimension_numbers<[1], [0], [0], [1], [0, 0, 1, 1], [], []>} : vector<16x96xf32>, vector<96x16xf32>, vector<16x16xf32> -> vector<16x16xf32>
    %cst_7 = arith.constant dense<0.000000e+00> : vector<16xf32>
    %10 = vector.multi_reduction <add>, %9, %cst_7 [1] : vector<16x16xf32> to vector<16xf32>
    %11 = vector.shape_cast %10 : vector<16xf32> to vector<16x1xf32>
    %12 = arith.mulf %9, %9 : vector<16x16xf32>
    %cst_8 = arith.constant dense<0.000000e+00> : vector<16xf32>
    %13 = vector.multi_reduction <add>, %12, %cst_8 [1] : vector<16x16xf32> to vector<16xf32>
    %14 = vector.shape_cast %13 : vector<16xf32> to vector<16x1xf32>
    %cst_9 = arith.constant 6.250000e-02 : f32
    %15 = vector.broadcast %cst_9 : f32 to vector<16x1xf32>
    %16 = arith.mulf %11, %15 : vector<16x1xf32>
    %cst_10 = arith.constant 6.250000e-02 : f32
    %17 = vector.broadcast %cst_10 : f32 to vector<16x1xf32>
    %18 = arith.mulf %14, %17 : vector<16x1xf32>
    %19 = arith.mulf %16, %16 : vector<16x1xf32>
    %20 = arith.subf %18, %19 : vector<16x1xf32>
    %21 = vector.broadcast %16 : vector<16x1xf32> to vector<16x16xf32>
    %22 = arith.subf %9, %21 : vector<16x16xf32>
    %cst_11 = arith.constant 9.99999974E-6 : f32
    %23 = vector.broadcast %cst_11 : f32 to vector<16x1xf32>
    %24 = arith.addf %20, %23 : vector<16x1xf32>
    %25 = math.rsqrt %24 : vector<16x1xf32>
    %26 = vector.broadcast %25 : vector<16x1xf32> to vector<16x16xf32>
    %27 = arith.mulf %22, %26 : vector<16x16xf32>
    %cst_12 = arith.constant 5.000000e-01 : f32
    %28 = vector.broadcast %cst_12 : f32 to vector<16x16xf32>
    %29 = arith.mulf %28, %27 : vector<16x16xf32>
    %30 = arith.mulf %27, %27 : vector<16x16xf32>
    %31 = arith.mulf %30, %27 : vector<16x16xf32>
    %cst_13 = arith.constant 4.471500e-02 : f32
    %32 = vector.broadcast %cst_13 : f32 to vector<16x16xf32>
    %33 = arith.mulf %32, %31 : vector<16x16xf32>
    %34 = arith.addf %27, %33 : vector<16x16xf32>
    %cst_14 = arith.constant 0.797884583 : f32
    %35 = vector.broadcast %cst_14 : f32 to vector<16x16xf32>
    %36 = arith.mulf %35, %34 : vector<16x16xf32>
    %37 = math.tanh %36 : vector<16x16xf32>
    %cst_15 = arith.constant 1.000000e+00 : f32
    %38 = vector.broadcast %cst_15 : f32 to vector<16x16xf32>
    %39 = arith.addf %38, %37 : vector<16x16xf32>
    %40 = arith.mulf %29, %39 : vector<16x16xf32>
    %c0_16 = arith.constant 0 : index
    %c0_17 = arith.constant 0 : index
    %41 = vector.load %arg5[%c0_16, %c0_17] : memref<16x16xf32, #tpu.memory_space<vmem>>, vector<16x16xf32>
    %cst_18 = arith.constant dense<0.000000e+00> : vector<16x16xf32>
    %42 = tpu.matmul %41, %40, %cst_18 {dimension_numbers = #tpu.dot_dimension_numbers<[1], [0], [0], [1], [0, 0, 1, 1], [], []>} : vector<16x16xf32>, vector<16x16xf32>, vector<16x16xf32> -> vector<16x16xf32>
    %c0_19 = arith.constant 0 : index
    %c0_20 = arith.constant 0 : index
    %43 = vector.load %arg6[%c0_19, %c0_20] : memref<16x16xf32, #tpu.memory_space<vmem>>, vector<16x16xf32>
    %c0_21 = arith.constant 0 : index
    %c0_22 = arith.constant 0 : index
    %c0_23 = arith.constant 0 : index
    %44 = vector.load %arg3[%c0_21, %c0_22, %c0_23] : memref<1x16x16xf32, #tpu.memory_space<vmem>>, vector<1x16x16xf32>
    %45 = vector.shape_cast %44 : vector<1x16x16xf32> to vector<16x16xf32>
    %cst_24 = arith.constant dense<0.000000e+00> : vector<16x16xf32>
    %46 = tpu.matmul %43, %45, %cst_24 {dimension_numbers = #tpu.dot_dimension_numbers<[1], [0], [0], [1], [0, 0, 1, 1], [], []>} : vector<16x16xf32>, vector<16x16xf32>, vector<16x16xf32> -> vector<16x16xf32>
    %47 = arith.addf %42, %46 : vector<16x16xf32>
    %cst_25 = arith.constant dense<0.000000e+00> : vector<16xf32>
    %48 = vector.multi_reduction <add>, %47, %cst_25 [1] : vector<16x16xf32> to vector<16xf32>
    %49 = vector.shape_cast %48 : vector<16xf32> to vector<16x1xf32>
    %50 = arith.mulf %47, %47 : vector<16x16xf32>
    %cst_26 = arith.constant dense<0.000000e+00> : vector<16xf32>
    %51 = vector.multi_reduction <add>, %50, %cst_26 [1] : vector<16x16xf32> to vector<16xf32>
    %52 = vector.shape_cast %51 : vector<16xf32> to vector<16x1xf32>
    %cst_27 = arith.constant 6.250000e-02 : f32
    %53 = vector.broadcast %cst_27 : f32 to vector<16x1xf32>
    %54 = arith.mulf %49, %53 : vector<16x1xf32>
    %cst_28 = arith.constant 6.250000e-02 : f32
    %55 = vector.broadcast %cst_28 : f32 to vector<16x1xf32>
    %56 = arith.mulf %52, %55 : vector<16x1xf32>
    %57 = arith.mulf %54, %54 : vector<16x1xf32>
    %58 = arith.subf %56, %57 : vector<16x1xf32>
    %59 = vector.broadcast %54 : vector<16x1xf32> to vector<16x16xf32>
    %60 = arith.subf %47, %59 : vector<16x16xf32>
    %cst_29 = arith.constant 9.99999974E-6 : f32
    %61 = vector.broadcast %cst_29 : f32 to vector<16x1xf32>
    %62 = arith.addf %58, %61 : vector<16x1xf32>
    %63 = math.rsqrt %62 : vector<16x1xf32>
    %64 = vector.broadcast %63 : vector<16x1xf32> to vector<16x16xf32>
    %65 = arith.mulf %60, %64 : vector<16x16xf32>
    %cst_30 = arith.constant 5.000000e-01 : f32
    %66 = vector.broadcast %cst_30 : f32 to vector<16x16xf32>
    %67 = arith.mulf %66, %65 : vector<16x16xf32>
    %68 = arith.mulf %65, %65 : vector<16x16xf32>
    %69 = arith.mulf %68, %65 : vector<16x16xf32>
    %cst_31 = arith.constant 4.471500e-02 : f32
    %70 = vector.broadcast %cst_31 : f32 to vector<16x16xf32>
    %71 = arith.mulf %70, %69 : vector<16x16xf32>
    %72 = arith.addf %65, %71 : vector<16x16xf32>
    %cst_32 = arith.constant 0.797884583 : f32
    %73 = vector.broadcast %cst_32 : f32 to vector<16x16xf32>
    %74 = arith.mulf %73, %72 : vector<16x16xf32>
    %75 = math.tanh %74 : vector<16x16xf32>
    %cst_33 = arith.constant 1.000000e+00 : f32
    %76 = vector.broadcast %cst_33 : f32 to vector<16x16xf32>
    %77 = arith.addf %76, %75 : vector<16x16xf32>
    %78 = arith.mulf %67, %77 : vector<16x16xf32>
    %c0_34 = arith.constant 0 : index
    %c0_35 = arith.constant 0 : index
    %c0_36 = arith.constant 0 : index
    %79 = vector.load %arg7[%c0_34, %c0_35, %c0_36] : memref<1x16x16xf32, #tpu.memory_space<vmem>>, vector<1x16x16xf32>
    %80 = vector.shape_cast %79 : vector<1x16x16xf32> to vector<16x16xf32>
    %81 = vector.shape_cast %78 : vector<16x16xf32> to vector<1x16x16xf32>
    tpu.vector_store %arg7[%c0_34, %c0_35, %c0_36], %81 {strides = array<i32>} : memref<1x16x16xf32, #tpu.memory_space<vmem>>, vector<1x16x16xf32>,
    return
  }
  func.func @transform_0(%arg0: i32) -> (i32, i32, i32) {
    %c0_i32 = arith.constant 0 : i32
    %c0_i32_0 = arith.constant 0 : i32
    %c0_i32_1 = arith.constant 0 : i32
    return %arg0, %c0_i32, %c0_i32_0 : i32, i32, i32
  }
  func.func @transform_1(%arg0: i32) -> (i32, i32) {
    %c0_i32 = arith.constant 0 : i32
    %c0_i32_0 = arith.constant 0 : i32
    %c0_i32_1 = arith.constant 0 : i32
    return %c0_i32, %c0_i32_0 : i32, i32
  }
  func.func @transform_2(%arg0: i32) -> (i32, i32, i32) {
    %c0_i32 = arith.constant 0 : i32
    %c0_i32_0 = arith.constant 0 : i32
    %c0_i32_1 = arith.constant 0 : i32
    return %arg0, %c0_i32, %c0_i32_0 : i32, i32, i32
  }
  func.func @transform_3(%arg0: i32) -> (i32, i32) {
    %c0_i32 = arith.constant 0 : i32
    %c0_i32_0 = arith.constant 0 : i32
    %c0_i32_1 = arith.constant 0 : i32
    return %c0_i32, %c0_i32_0 : i32, i32
  }
  func.func @transform_4(%arg0: i32) -> (i32, i32) {
    %c0_i32 = arith.constant 0 : i32
    %c0_i32_0 = arith.constant 0 : i32
    %c0_i32_1 = arith.constant 0 : i32
    return %c0_i32, %c0_i32_0 : i32, i32
  }
  func.func @transform_5(%arg0: i32) -> (i32, i32) {
    %c0_i32 = arith.constant 0 : i32
    %c0_i32_0 = arith.constant 0 : i32
    %c0_i32_1 = arith.constant 0 : i32
    return %c0_i32, %c0_i32_0 : i32, i32
  }
  func.func @transform_6(%arg0: i32) -> (i32, i32, i32) {
    %c0_i32 = arith.constant 0 : i32
    %c0_i32_0 = arith.constant 0 : i32
    %c0_i32_1 = arith.constant 0 : i32
    return %arg0, %c0_i32, %c0_i32_0 : i32, i32, i32
  }
}

</mosaic_0001>

<llo_original>
// kernel: tpu_custom_call.1
$region0: #{tpu_custom_call.1}
  #allocation0 [shape = 'u32[]', space=smem, size = 0x4, offset = 0x4, fixed_abs, tag = 'smem constant byte address 0x4 - core index']
  #allocation1 [shape = 'u32[144,128]{1,0:T(1,128)}', space=vmem, size = 0x12000, scoped, tag = 'internal scratch']
  %s0 = inlined_call_operand.vmem [shape: f32[2,32,8], index: 0, kind: input, shape index: {}]
  %s1 = inlined_call_operand.hbm [shape: f32[8,18], index: 1, kind: input, shape index: {}]
  %s2 = inlined_call_operand.vmem [shape: f32[2,16,16], index: 2, kind: input, shape index: {}]
  %s3 = inlined_call_operand.vmem [shape: f32[16,96], index: 3, kind: input, shape index: {}]
  %s4 = inlined_call_operand.vmem [shape: f32[16,16], index: 4, kind: input, shape index: {}]
  %s5 = inlined_call_operand.vmem [shape: f32[16,16], index: 5, kind: input, shape index: {}]
  %s6 = inlined_call_operand.hbm [shape: f32[2,16,16], index: 6, kind: output, shape index: {}]
  %s7 = sld [smem:[#allocation0]]
  $region61: #{tpu_custom_call.1} parent=0
    _
  %s9 = ssub.s32 1, %s7
  %s10 = scalar_select 0, %s9, %s7
  $region1: #{tpu_custom_call.1} parent=0
    #allocation2 [shape = 'u8[4096]{0}', space=vmem, size = 0x1000, scoped, tag = 'input window, operand 1, single buffered']
    #allocation3 [shape = 's32[2]{0}', space=sflag, size = 0x8, scoped, tag = 'scoped memory for tpu_custom_call.1']
    #allocation4 [shape = 's32[2]{0}', space=sflag, size = 0x8, scoped, tag = 'scoped memory for tpu_custom_call.1']
    #allocation5 [shape = 'u8[16384]{0}', space=vmem, size = 0x4000, scoped, tag = 'output window, operand 0']
    %11 = vsyncpa [#allocation3], 0
    %12 = vsyncpa [#allocation4], 0
    %s13 = scalar_lea.sflag [#allocation4], 1
    %14 = vsyncpa %s13, 0
    loop: start=0, step=1, limit=4
    $region2: #{tpu_custom_call.1} parent=1 // loop_pre_header
      _
    $region3: #{tpu_custom_call.1} parent=1 // loop_header
      %s16 = sphi 0, %s20
      %p17 = scmp.ge.s32.totalorder %s16, 4
      %s26 = sphi 0, %s28
      %s29 = sphi 0, %s26
      %s30 = sphi 0, %s29
      %s46 = sphi 0, %s30
      %s50 = sphi 0, %s50
      %s52 = sphi 0, %s50
      %s53 = sphi 0, %s52
      %s67 = sphi 0, %s53
      %s73 = sphi 0, %s75
      %s76 = sphi 0, %s73
      %s77 = sphi 0, %s76
      %s93 = sphi 0, %s77
      %s97 = sphi 0, %s97
      %s99 = sphi 0, %s97
      %s100 = sphi 0, %s99
      %s114 = sphi 0, %s100
      %s118 = sphi 0, %s118
      %s120 = sphi 0, %s118
      %s121 = sphi 0, %s120
      %s135 = sphi 0, %s121
      %s139 = sphi 0, %s139
      %s141 = sphi 0, %s139
      %s142 = sphi 0, %s141
      %s156 = sphi 0, %s142
      %s162 = sphi 0, %s164
      %s165 = sphi 0, %s162
      %s166 = sphi 0, %s165
      %s182 = sphi 0, %s166
    $region4: #{tpu_custom_call.1} parent=1 // loop_header_branch
      %19 = sbr.rel (%p17) target = $region8
    $region5: #{tpu_custom_call.1} parent=1 // loop_body
      %s21 = ssub.s32 %s16, 1
      %s22 = ssub.s32 %s16, 2
      %s23 = sadd.s32 %s16, 1
      %s24 = ssub.s32 %s16, %s23
      %p25 = scmp.eq.s32.totalorder %s24, 0
      %s27 = sadd.s32 %s26, 1
      %s28 = scalar_select %p25, %s26, %s27
      %p31 = pneg %p25
      %p32 = scmp.eq.s32.totalorder %s16, 1
      %p33 = por %p31, %p32
      %p34 = scmp.ne.s32.totalorder %s26, %s29
      %p35 = scmp.eq.s32.totalorder %s16, 0
      %p36 = por %p34, %p35
      %p37 = scmp.ne.s32.totalorder %s26, %s29
      %p38 = scmp.eq.s32.totalorder %s21, 1
      %p39 = por %p37, %p38
      %p40 = scmp.ne.s32.totalorder %s29, %s30
      %p41 = scmp.eq.s32.totalorder %s21, 0
      %p42 = por %p40, %p41
      %p43 = scmp.ne.s32.totalorder %s29, %s30
      %p44 = scmp.eq.s32.totalorder %s22, 1
      %p45 = por %p43, %p44
      %p47 = scmp.ne.s32.totalorder %s30, %s46
      %p48 = scmp.eq.s32.totalorder %s22, 0
      %p49 = por %p47, %p48
      %s51 = sadd.s32 %s50, 1
      %p54 = scmp.eq.s32.totalorder %s16, 1
      %p55 = scmp.ne.s32.totalorder %s50, %s52
      %p56 = scmp.eq.s32.totalorder %s16, 0
      %p57 = por %p55, %p56
      %p58 = scmp.ne.s32.totalorder %s50, %s52
      %p59 = scmp.eq.s32.totalorder %s21, 1
      %p60 = por %p58, %p59
      %p61 = scmp.ne.s32.totalorder %s52, %s53
      %p62 = scmp.eq.s32.totalorder %s21, 0
      %p63 = por %p61, %p62
      %p64 = scmp.ne.s32.totalorder %s52, %s53
      %p65 = scmp.eq.s32.totalorder %s22, 1
      %p66 = por %p64, %p65
      %p68 = scmp.ne.s32.totalorder %s53, %s67
      %p69 = scmp.eq.s32.totalorder %s22, 0
      %p70 = por %p68, %p69
      %s71 = ssub.s32 %s16, %s23
      %p72 = scmp.eq.s32.totalorder %s71, 0
      %s74 = sadd.s32 %s73, 1
      %s75 = scalar_select %p72, %s73, %s74
      %p78 = pneg %p72
      %p79 = scmp.eq.s32.totalorder %s16, 1
      %p80 = por %p78, %p79
      %p81 = scmp.ne.s32.totalorder %s73, %s76
      %p82 = scmp.eq.s32.totalorder %s16, 0
      %p83 = por %p81, %p82
      %p84 = scmp.ne.s32.totalorder %s73, %s76
      %p85 = scmp.eq.s32.totalorder %s21, 1
      %p86 = por %p84, %p85
      %p87 = scmp.ne.s32.totalorder %s76, %s77
      %p88 = scmp.eq.s32.totalorder %s21, 0
      %p89 = por %p87, %p88
      %p90 = scmp.ne.s32.totalorder %s76, %s77
      %p91 = scmp.eq.s32.totalorder %s22, 1
      %p92 = por %p90, %p91
      %p94 = scmp.ne.s32.totalorder %s77, %s93
      %p95 = scmp.eq.s32.totalorder %s22, 0
      %p96 = por %p94, %p95
      %s98 = sadd.s32 %s97, 1
      %p101 = scmp.eq.s32.totalorder %s16, 1
      %p102 = scmp.ne.s32.totalorder %s97, %s99
      %p103 = scmp.eq.s32.totalorder %s16, 0
      %p104 = por %p102, %p103
      %p105 = scmp.ne.s32.totalorder %s97, %s99
      %p106 = scmp.eq.s32.totalorder %s21, 1
      %p107 = por %p105, %p106
      %p108 = scmp.ne.s32.totalorder %s99, %s100
      %p109 = scmp.eq.s32.totalorder %s21, 0
      %p110 = por %p108, %p109
      %p111 = scmp.ne.s32.totalorder %s99, %s100
      %p112 = scmp.eq.s32.totalorder %s22, 1
      %p113 = por %p111, %p112
      %p115 = scmp.ne.s32.totalorder %s100, %s114
      %p116 = scmp.eq.s32.totalorder %s22, 0
      %p117 = por %p115, %p116
      %s119 = sadd.s32 %s118, 1
      %p122 = scmp.eq.s32.totalorder %s16, 1
      %p123 = scmp.ne.s32.totalorder %s118, %s120
      %p124 = scmp.eq.s32.totalorder %s16, 0
      %p125 = por %p123, %p124
      %p126 = scmp.ne.s32.totalorder %s118, %s120
      %p127 = scmp.eq.s32.totalorder %s21, 1
      %p128 = por %p126, %p127
      %p129 = scmp.ne.s32.totalorder %s120, %s121
      %p130 = scmp.eq.s32.totalorder %s21, 0
      %p131 = por %p129, %p130
      %p132 = scmp.ne.s32.totalorder %s120, %s121
      %p133 = scmp.eq.s32.totalorder %s22, 1
      %p134 = por %p132, %p133
      %p136 = scmp.ne.s32.totalorder %s121, %s135
      %p137 = scmp.eq.s32.totalorder %s22, 0
      %p138 = por %p136, %p137
      %s140 = sadd.s32 %s139, 1
      %p143 = scmp.eq.s32.totalorder %s16, 1
      %p144 = scmp.ne.s32.totalorder %s139, %s141
      %p145 = scmp.eq.s32.totalorder %s16, 0
      %p146 = por %p144, %p145
      %p147 = scmp.ne.s32.totalorder %s139, %s141
      %p148 = scmp.eq.s32.totalorder %s21, 1
      %p149 = por %p147, %p148
      %p150 = scmp.ne.s32.totalorder %s141, %s142
      %p151 = scmp.eq.s32.totalorder %s21, 0
      %p152 = por %p150, %p151
      %p153 = scmp.ne.s32.totalorder %s141, %s142
      %p154 = scmp.eq.s32.totalorder %s22, 1
      %p155 = por %p153, %p154
      %p157 = scmp.ne.s32.totalorder %s142, %s156
      %p158 = scmp.eq.s32.totalorder %s22, 0
      %p159 = por %p157, %p158
      %s160 = ssub.s32 %s16, %s23
      %p161 = scmp.eq.s32.totalorder %s160, 0
      %s163 = sadd.s32 %s162, 1
      %s164 = scalar_select %p161, %s162, %s163
      %p167 = pneg %p161
      %p168 = scmp.eq.s32.totalorder %s16, 1
      %p169 = por %p167, %p168
      %p170 = scmp.ne.s32.totalorder %s162, %s165
      %p171 = scmp.eq.s32.totalorder %s16, 0
      %p172 = por %p170, %p171
      %p173 = scmp.ne.s32.totalorder %s162, %s165
      %p174 = scmp.eq.s32.totalorder %s21, 1
      %p175 = por %p173, %p174
      %p176 = scmp.ne.s32.totalorder %s165, %s166
      %p177 = scmp.eq.s32.totalorder %s21, 0
      %p178 = por %p176, %p177
      %p179 = scmp.ne.s32.totalorder %s165, %s166
      %p180 = scmp.eq.s32.totalorder %s22, 1
      %p181 = por %p179, %p180
      %p183 = scmp.ne.s32.totalorder %s166, %s182
      %p184 = scmp.eq.s32.totalorder %s22, 0
      %p185 = por %p183, %p184
      %p186 = scmp.le.s32.totalorder 1, %s16
      %p187 = scmp.lt.s32.totalorder %s16, 3
      %p188 = pnand %p186, %p187
      %p189 = pneg %p188
      // Predicated region
      $region9: #{tpu_custom_call.1} parent=5 // pred_check
        _
      $region10: #{tpu_custom_call.1} parent=5 // pred_check_branch
        %191 = sbr.rel (%p188) target = $region12
      $region11: #{tpu_custom_call.1} parent=5 // pred_region
        %s192 = ssub.s32 %s16, 1
        // Predicated region
        $region13: #{tpu_custom_call.1} parent=11 // pred_check
          %p193 = pneg %p63
        $region14: #{tpu_custom_call.1} parent=11 // pred_check_branch
          %195 = sbr.rel (%p193) target = $region16
        $region15: #{tpu_custom_call.1} parent=11 // pred_region
          %s197 = ssub.s32 128, 128
          %198 = vsyncadd [#allocation3], %s197
          %s200 = sshll.u32 [#allocation2], 4
          %s201 = int_to_ptr.vmem [resolvable:$true] %s200
          %203 = dma.hbm_to_vmem [thread:$0]  %s1, 128, %s201, [#allocation3]
        $region16: #{tpu_custom_call.1} parent=11 // pred_fallthru
          _
        // Predicated region
        $region17: #{tpu_custom_call.1} parent=11 // pred_check
          %p204 = pneg %p110
        $region18: #{tpu_custom_call.1} parent=11 // pred_check_branch
          %206 = sbr.rel (%p204) target = $region20
        $region19: #{tpu_custom_call.1} parent=11 // pred_region
          _
        $region20: #{tpu_custom_call.1} parent=11 // pred_fallthru
          _
        // Predicated region
        $region21: #{tpu_custom_call.1} parent=11 // pred_check
          %p207 = pneg %p131
        $region22: #{tpu_custom_call.1} parent=11 // pred_check_branch
          %209 = sbr.rel (%p207) target = $region24
        $region23: #{tpu_custom_call.1} parent=11 // pred_region
          _
        $region24: #{tpu_custom_call.1} parent=11 // pred_fallthru
          _
        // Predicated region
        $region25: #{tpu_custom_call.1} parent=11 // pred_check
          %p210 = pneg %p152
        $region26: #{tpu_custom_call.1} parent=11 // pred_check_branch
          %212 = sbr.rel (%p210) target = $region28
        $region27: #{tpu_custom_call.1} parent=11 // pred_region
          _
        $region28: #{tpu_custom_call.1} parent=11 // pred_fallthru
          _
      $region12: #{tpu_custom_call.1} parent=5 // pred_fallthru
        _
      %p213 = scmp.lt.s32.totalorder %s16, 2
      // Predicated region
      $region29: #{tpu_custom_call.1} parent=5 // pred_check
        %p214 = pneg %p213
      $region30: #{tpu_custom_call.1} parent=5 // pred_check_branch
        %216 = sbr.rel (%p214) target = $region32
      $region31: #{tpu_custom_call.1} parent=5 // pred_region
        // Predicated region
        $region33: #{tpu_custom_call.1} parent=31 // pred_check
          %p217 = pneg %p36
        $region34: #{tpu_custom_call.1} parent=31 // pred_check_branch
          %219 = sbr.rel (%p217) target = $region36
        $region35: #{tpu_custom_call.1} parent=31 // pred_region
          %p220 = scmp.lt.s32.totalorder %s16, 1
          %s221 = scalar_select %p220, %s16, 1
          %s222 = smul.addr %s221, 4
          %s223 = smul.addr %s222, 8
          %s224 = scalar_lea.vmem %s0, %s223
        $region36: #{tpu_custom_call.1} parent=31 // pred_fallthru
          _
        // Predicated region
        $region37: #{tpu_custom_call.1} parent=31 // pred_check
          %p225 = pneg %p83
        $region38: #{tpu_custom_call.1} parent=31 // pred_check_branch
          %227 = sbr.rel (%p225) target = $region40
        $region39: #{tpu_custom_call.1} parent=31 // pred_region
          %p228 = scmp.lt.s32.totalorder %s16, 1
          %s229 = scalar_select %p228, %s16, 1
          %s230 = smul.addr %s229, 2
          %s231 = smul.addr %s230, 8
          %s232 = scalar_lea.vmem %s2, %s231
        $region40: #{tpu_custom_call.1} parent=31 // pred_fallthru
          _
      $region32: #{tpu_custom_call.1} parent=5 // pred_fallthru
        _
      %p233 = scmp.le.s32.totalorder 1, %s16
      %p234 = scmp.lt.s32.totalorder %s16, 3
      %p235 = pnand %p233, %p234
      %p236 = pneg %p235
      // Predicated region
      $region41: #{tpu_custom_call.1} parent=5 // pred_check
        _
      $region42: #{tpu_custom_call.1} parent=5 // pred_check_branch
        %238 = sbr.rel (%p235) target = $region44
      $region43: #{tpu_custom_call.1} parent=5 // pred_region
        %s239 = ssub.s32 %s16, 1
        // Predicated region
        $region45: #{tpu_custom_call.1} parent=43 // pred_check
          %p240 = pneg %p63
        $region46: #{tpu_custom_call.1} parent=43 // pred_check_branch
          %242 = sbr.rel (%p240) target = $region48
        $region47: #{tpu_custom_call.1} parent=43 // pred_region
          %243 = dma.done [#allocation3], 128
        $region48: #{tpu_custom_call.1} parent=43 // pred_fallthru
          _
        %p244 = scmp.lt.s32.totalorder %s21, 1
        %s245 = scalar_select %p244, %s21, 1
        %s246 = smul.addr %s245, 4
        %s247 = smul.addr %s246, 8
        %s248 = scalar_lea.vmem %s0, %s247
        %p249 = pneg %p42
        %p250 = pneg %p39
        %p251 = pneg %p63
        %p252 = pneg %p60
        %p253 = scmp.lt.s32.totalorder %s21, 1
        %s254 = scalar_select %p253, %s21, 1
        %s255 = smul.addr %s254, 2
        %s256 = smul.addr %s255, 8
        %s257 = scalar_lea.vmem %s2, %s256
        %p258 = pneg %p89
        %p259 = pneg %p86
        %p260 = pneg %p110
        %p261 = pneg %p107
        %p262 = pneg %p131
        %p263 = pneg %p128
        %p264 = pneg %p152
        %p265 = pneg %p149
        %p266 = pneg %p178
        %p267 = pneg %p175
        %s268 = sand.u32 %s165, 1
        %s269 = scalar_lea.sflag [#allocation4], %s268
        %s270 = sand.u32 %s165, 1
        %s271 = smul.addr %s270, 16
        %s272 = scalar_lea.vmem [#allocation5], %s271
        %p273 = scmp.lt.s32.totalorder %s21, 1
        %s274 = scalar_select %p273, %s21, 1
        %s275 = smul.addr %s274, 4
        %s276 = smul.addr %s275, 8
        %s277 = scalar_lea.vmem %s0, %s276
        %p278 = scmp.lt.s32.totalorder %s21, 1
        %s279 = scalar_select %p278, %s21, 1
        %s280 = smul.addr %s279, 2
        %s281 = smul.addr %s280, 8
        %s282 = scalar_lea.vmem %s2, %s281
        %v283 = vld [vmem:[%s277] sm:$0xff]
        %v284 = vld [vmem:[%s277 + $0x8] sm:$0xff]
        %v285 = vld [vmem:[%s277 + $0x10] sm:$0xff]
        %v286 = vld [vmem:[%s277 + $0x18] sm:$0xff]
        %v287 = vld [vmem:[#allocation2] sm:$0xff]
        %vm288 = vcmask 64512
        %v290 = vsel %vm288, %v283, 0
        %v293 = vsel %vm288, %v284, 0
        %v296 = vsel %vm288, %v285, 0
        %v299 = vsel %vm288, %v286, 0
        %301 = vmatprep.subr.mxu0 0.0
        %302 = vmatpush1.msra.mxu0 0.0
        %303 = vmatprep.subr.mxu0 0.0
        %304 = vmatpush1.msra.mxu0 0.0
        %305 = vmatprep.subr.mxu0 0.0
        %306 = vmatpush1.msra.mxu0 0.0
        %307 = vmatprep.subr.mxu0 0.0
        %308 = vmatpush1.msra.mxu0 0.0
        %309 = vmatprep.subr.mxu0 0.0
        %310 = vmatpush1.msra.mxu0 0.0
        %311 = vmatprep.subr.mxu0 0.0
        %312 = vmatpush1.msra.mxu0 0.0
        %313 = vmatprep.subr.mxu0 0.0
        %314 = vmatpush1.msra.mxu0 0.0
        %315 = vmatprep.subr.mxu0 0.0
        %316 = vmatpush1.msra.mxu0 0.0
        %317 = vmatprep.subr.mxu0 0.0
        %318 = vmatpush1.msra.mxu0 0.0
        %319 = vmatprep.subr.mxu0 0.0
        %320 = vmatpush1.msra.mxu0 0.0
        %321 = vmatprep.subr.mxu0 0.0
        %322 = vmatpush1.msra.mxu0 0.0
        %323 = vmatprep.subr.mxu0 0.0
        %324 = vmatpush1.msra.mxu0 0.0
        %325 = vmatprep.subr.mxu0 0.0
        %326 = vmatpush1.msra.mxu0 0.0
        %327 = vmatprep.subr.mxu0 0.0
        %328 = vmatpush1.msra.mxu0 0.0
        %329 = vmatprep.subr.mxu0 0.0
        %330 = vmatpush1.msra.mxu0 0.0
        %331 = vmatprep.subr.mxu0 0.0
        %332 = vmatpush1.msra.mxu0 %v287
        %333 = vmatprep.subr.mxu0 0.0
        %334 = vmatpush2.msra.mxu0 0.0
        %335 = vmatprep.subr.mxu0 0.0
        %336 = vmatpush2.msra.mxu0 0.0
        %337 = vmatprep.subr.mxu0 0.0
        %338 = vmatpush2.msra.mxu0 0.0
        %339 = vmatprep.subr.mxu0 0.0
        %340 = vmatpush2.msra.mxu0 0.0
        %341 = vmatprep.subr.mxu0 0.0
        %342 = vmatpush2.msra.mxu0 0.0
        %343 = vmatprep.subr.mxu0 0.0
        %344 = vmatpush2.msra.mxu0 0.0
        %345 = vmatprep.subr.mxu0 0.0
        %346 = vmatpush2.msra.mxu0 0.0
        %347 = vmatprep.subr.mxu0 0.0
        %348 = vmatpush2.msra.mxu0 0.0
        %349 = vmatprep.subr.mxu0 0.0
        %350 = vmatpush2.msra.mxu0 0.0
        %351 = vmatprep.subr.mxu0 0.0
        %352 = vmatpush2.msra.mxu0 0.0
        %353 = vmatprep.subr.mxu0 0.0
        %354 = vmatpush2.msra.mxu0 0.0
        %355 = vmatprep.subr.mxu0 0.0
        %356 = vmatpush2.msra.mxu0 0.0
        %357 = vmatprep.subr.mxu0 0.0
        %358 = vmatpush2.msra.mxu0 0.0
        %359 = vmatprep.subr.mxu0 0.0
        %360 = vmatpush2.msra.mxu0 0.0
        %361 = vmatprep.subr.mxu0 0.0
        %362 = vmatpush2.msra.mxu0 0.0
        %363 = vmatprep.subr.mxu0 0.0
        %364 = vmatpush2.msra.mxu0 0.0
        %365 = vmatprep.mubr.f32.mxu0 0.0
        %366 = vmatmul.mubr.f32.gmra.mxu0 %v290
        %v367 = vpop.f32.mrf.mxu0
        %v368 = vadd.f32 0.0, %v367
        %v369 = vpop.f32.mrf.mxu0
        %370 = vmatprep.mubr.f32.mxu0 0.0
        %371 = vmatmul.mubr.f32.gmra.mxu0 %v293
        %v372 = vpop.f32.mrf.mxu0
        %v373 = vadd.f32 0.0, %v372
        %v374 = vpop.f32.mrf.mxu0
        %375 = vmatprep.mubr.f32.mxu0 0.0
        %376 = vmatmul.mubr.f32.gmra.mxu0 %v296
        %v377 = vpop.f32.mrf.mxu0
        %v378 = vadd.f32 0.0, %v377
        %v379 = vpop.f32.mrf.mxu0
        %380 = vmatprep.mubr.f32.mxu0 0.0
        %381 = vmatmul.mubr.f32.gmra.mxu0 %v299
        %v382 = vpop.f32.mrf.mxu0
        %v383 = vadd.f32 0.0, %v382
        %v384 = vpop.f32.mrf.mxu0
        %385 = vdwg.mxu0
        %390 = vrot.lane.b32.xlu0 %v368, 127
        %v391 = vpop.permute.xlu0 %390
        %392 = vrot.lane.b32.xlu0 %v373, 127
        %v393 = vpop.permute.xlu0 %392
        %394 = vrot.lane.b32.xlu0 %v378, 127
        %v395 = vpop.permute.xlu0 %394
        %396 = vrot.lane.b32.xlu0 %v383, 127
        %v397 = vpop.permute.xlu0 %396
        %402 = vrot.lane.b32.xlu0 %v368, 126
        %v403 = vpop.permute.xlu0 %402
        %404 = vrot.lane.b32.xlu0 %v373, 126
        %v405 = vpop.permute.xlu0 %404
        %406 = vrot.lane.b32.xlu0 %v378, 126
        %v407 = vpop.permute.xlu0 %406
        %408 = vrot.lane.b32.xlu0 %v383, 126
        %v409 = vpop.permute.xlu0 %408
        %v414 = vld [vmem:[%s3] sm:$0xff]
        %v415 = vld [vmem:[%s3 + $0x8] sm:$0xff]
        %vm416 = vcmask 785408
        %v418 = vsel %vm416, %v414, 0
        %v421 = vsel %vm416, %v415, 0
        %423 = vmatprep.subr.mxu0 0.0
        %424 = vmatpush1.msra.mxu0 0.0
        %425 = vmatprep.subr.mxu0 0.0
        %426 = vmatpush1.msra.mxu0 0.0
        %427 = vmatprep.subr.mxu0 0.0
        %428 = vmatpush1.msra.mxu0 0.0
        %429 = vmatprep.subr.mxu0 0.0
        %430 = vmatpush1.msra.mxu0 0.0
        %431 = vmatprep.subr.mxu0 0.0
        %432 = vmatpush1.msra.mxu0 %v409
        %433 = vmatprep.subr.mxu0 0.0
        %434 = vmatpush1.msra.mxu0 %v407
        %435 = vmatprep.subr.mxu0 0.0
        %436 = vmatpush1.msra.mxu0 %v405
        %437 = vmatprep.subr.mxu0 0.0
        %438 = vmatpush1.msra.mxu0 %v403
        %439 = vmatprep.subr.mxu0 0.0
        %440 = vmatpush1.msra.mxu0 %v397
        %441 = vmatprep.subr.mxu0 0.0
        %442 = vmatpush1.msra.mxu0 %v395
        %443 = vmatprep.subr.mxu0 0.0
        %444 = vmatpush1.msra.mxu0 %v393
        %445 = vmatprep.subr.mxu0 0.0
        %446 = vmatpush1.msra.mxu0 %v391
        %447 = vmatprep.subr.mxu0 0.0
        %448 = vmatpush1.msra.mxu0 %v383
        %449 = vmatprep.subr.mxu0 0.0
        %450 = vmatpush1.msra.mxu0 %v378
        %451 = vmatprep.subr.mxu0 0.0
        %452 = vmatpush1.msra.mxu0 %v373
        %453 = vmatprep.subr.mxu0 0.0
        %454 = vmatpush1.msra.mxu0 %v368
        %455 = vmatprep.subr.mxu0 0.0
        %456 = vmatpush2.msra.mxu0 0.0
        %457 = vmatprep.subr.mxu0 0.0
        %458 = vmatpush2.msra.mxu0 0.0
        %459 = vmatprep.subr.mxu0 0.0
        %460 = vmatpush2.msra.mxu0 0.0
        %461 = vmatprep.subr.mxu0 0.0
        %462 = vmatpush2.msra.mxu0 0.0
        %463 = vmatprep.subr.mxu0 0.0
        %464 = vmatpush2.msra.mxu0 0.0
        %465 = vmatprep.subr.mxu0 0.0
        %466 = vmatpush2.msra.mxu0 0.0
        %467 = vmatprep.subr.mxu0 0.0
        %468 = vmatpush2.msra.mxu0 0.0
        %469 = vmatprep.subr.mxu0 0.0
        %470 = vmatpush2.msra.mxu0 0.0
        %471 = vmatprep.subr.mxu0 0.0
        %472 = vmatpush2.msra.mxu0 0.0
        %473 = vmatprep.subr.mxu0 0.0
        %474 = vmatpush2.msra.mxu0 0.0
        %475 = vmatprep.subr.mxu0 0.0
        %476 = vmatpush2.msra.mxu0 0.0
        %477 = vmatprep.subr.mxu0 0.0
        %478 = vmatpush2.msra.mxu0 0.0
        %479 = vmatprep.subr.mxu0 0.0
        %480 = vmatpush2.msra.mxu0 0.0
        %481 = vmatprep.subr.mxu0 0.0
        %482 = vmatpush2.msra.mxu0 0.0
        %483 = vmatprep.subr.mxu0 0.0
        %484 = vmatpush2.msra.mxu0 0.0
        %485 = vmatprep.subr.mxu0 0.0
        %486 = vmatpush2.msra.mxu0 0.0
        %487 = vmatprep.mubr.f32.mxu0 0.0
        %488 = vmatmul.mubr.f32.gmra.mxu0 %v418
        %v489 = vpop.f32.mrf.mxu0
        %v490 = vadd.f32 0.0, %v489
        %v491 = vpop.f32.mrf.mxu0
        %492 = vmatprep.mubr.f32.mxu0 0.0
        %493 = vmatmul.mubr.f32.gmra.mxu0 %v421
        %v494 = vpop.f32.mrf.mxu0
        %v495 = vadd.f32 0.0, %v494
        %v496 = vpop.f32.mrf.mxu0
        %497 = vdwg.mxu0
        %vm498 = vcmask 130048
        %v499 = vsel %vm498, %v490, 0.0
        %500 = vadd.xlane.f32.xlu0 %v499
        %v501 = vpop.xlane.xlu0 %500
        %v502 = vsel %vm498, %v495, 0.0
        %503 = vadd.xlane.f32.xlu0 %v502
        %v504 = vpop.xlane.xlu0 %503
        %v505 = vmul.f32 %v490, %v490
        %v506 = vmul.f32 %v495, %v495
        %v507 = vsel %vm498, %v505, 0.0
        %508 = vadd.xlane.f32.xlu0 %v507
        %v509 = vpop.xlane.xlu0 %508
        %v510 = vsel %vm498, %v506, 0.0
        %511 = vadd.xlane.f32.xlu0 %v510
        %v512 = vpop.xlane.xlu0 %511
        %v513 = vmul.f32 %v501, 0.0625
        %v514 = vmul.f32 %v504, 0.0625
        %v515 = vmul.f32 %v509, 0.0625
        %v516 = vmul.f32 %v512, 0.0625
        %v517 = vmul.f32 %v513, %v513
        %v518 = vmul.f32 %v514, %v514
        %v519 = vsub.f32 %v515, %v517
        %v520 = vsub.f32 %v516, %v518
        %v521 = vsub.f32 %v490, %v513
        %v522 = vsub.f32 %v495, %v514
        %v523 = vadd.f32 %v519, 1e-05
        %v524 = vadd.f32 %v520, 1e-05
        %v525 = vrsqrt.pop %v523
        %v526 = vrsqrt.pop %v524
        %v527 = vmul.f32 %v521, %v525
        %v528 = vmul.f32 %v522, %v526
        %v529 = vmul.f32 %v527, 0.5
        %v530 = vmul.f32 %v528, 0.5
        %v531 = vmul.f32 %v527, %v527
        %v532 = vmul.f32 %v528, %v528
        %v533 = vmul.f32 %v531, %v527
        %v534 = vmul.f32 %v532, %v528
        %v535 = vmul.f32 %v533, 0.044715
        %v536 = vmul.f32 %v534, 0.044715
        %v537 = vadd.f32 %v527, %v535
        %v538 = vadd.f32 %v528, %v536
        %v539 = vmul.f32 %v537, 0.7978846
        %v540 = vmul.f32 %v538, 0.7978846
        %v541 = vtanh.pop %v539
        %v542 = vtanh.pop %v540
        %v543 = vadd.f32 %v541, 1.0
        %v544 = vadd.f32 %v542, 1.0
        %v545 = vmul.f32 %v529, %v543
        %v546 = vmul.f32 %v530, %v544
        %v547 = vld [vmem:[%s4] sm:$0xff]
        %v548 = vld [vmem:[%s4 + $0x8] sm:$0xff]
        %v549 = vld [vmem:[%s5] sm:$0xff]
        %v550 = vld [vmem:[%s5 + $0x8] sm:$0xff]
        %v551 = vld [vmem:[%s282] sm:$0xff]
        %v552 = vld [vmem:[%s282 + $0x8] sm:$0xff]
        %v554 = vsel %vm498, %v549, 0
        %v557 = vsel %vm498, %v550, 0
        %559 = vmatprep.subr.mxu0 0.0
        %560 = vmatpush1.msra.mxu0 0.0
        %561 = vmatprep.subr.mxu0 0.0
        %562 = vmatpush1.msra.mxu0 0.0
        %563 = vmatprep.subr.mxu0 0.0
        %564 = vmatpush1.msra.mxu0 0.0
        %565 = vmatprep.subr.mxu0 0.0
        %566 = vmatpush1.msra.mxu0 0.0
        %567 = vmatprep.subr.mxu0 0.0
        %568 = vmatpush1.msra.mxu0 0.0
        %569 = vmatprep.subr.mxu0 0.0
        %570 = vmatpush1.msra.mxu0 0.0
        %571 = vmatprep.subr.mxu0 0.0
        %572 = vmatpush1.msra.mxu0 0.0
        %573 = vmatprep.subr.mxu0 0.0
        %574 = vmatpush1.msra.mxu0 0.0
        %575 = vmatprep.subr.mxu0 0.0
        %576 = vmatpush1.msra.mxu0 0.0
        %577 = vmatprep.subr.mxu0 0.0
        %578 = vmatpush1.msra.mxu0 0.0
        %579 = vmatprep.subr.mxu0 0.0
        %580 = vmatpush1.msra.mxu0 0.0
        %581 = vmatprep.subr.mxu0 0.0
        %582 = vmatpush1.msra.mxu0 0.0
        %583 = vmatprep.subr.mxu0 0.0
        %584 = vmatpush1.msra.mxu0 0.0
        %585 = vmatprep.subr.mxu0 0.0
        %586 = vmatpush1.msra.mxu0 0.0
        %587 = vmatprep.subr.mxu0 0.0
        %588 = vmatpush1.msra.mxu0 %v552
        %589 = vmatprep.subr.mxu0 0.0
        %590 = vmatpush1.msra.mxu0 %v551
        %591 = vmatprep.subr.mxu0 0.0
        %592 = vmatpush2.msra.mxu0 0.0
        %593 = vmatprep.subr.mxu0 0.0
        %594 = vmatpush2.msra.mxu0 0.0
        %595 = vmatprep.subr.mxu0 0.0
        %596 = vmatpush2.msra.mxu0 0.0
        %597 = vmatprep.subr.mxu0 0.0
        %598 = vmatpush2.msra.mxu0 0.0
        %599 = vmatprep.subr.mxu0 0.0
        %600 = vmatpush2.msra.mxu0 0.0
        %601 = vmatprep.subr.mxu0 0.0
        %602 = vmatpush2.msra.mxu0 0.0
        %603 = vmatprep.subr.mxu0 0.0
        %604 = vmatpush2.msra.mxu0 0.0
        %605 = vmatprep.subr.mxu0 0.0
        %606 = vmatpush2.msra.mxu0 0.0
        %607 = vmatprep.subr.mxu0 0.0
        %608 = vmatpush2.msra.mxu0 0.0
        %609 = vmatprep.subr.mxu0 0.0
        %610 = vmatpush2.msra.mxu0 0.0
        %611 = vmatprep.subr.mxu0 0.0
        %612 = vmatpush2.msra.mxu0 0.0
        %613 = vmatprep.subr.mxu0 0.0
        %614 = vmatpush2.msra.mxu0 0.0
        %615 = vmatprep.subr.mxu0 0.0
        %616 = vmatpush2.msra.mxu0 0.0
        %617 = vmatprep.subr.mxu0 0.0
        %618 = vmatpush2.msra.mxu0 0.0
        %619 = vmatprep.subr.mxu0 0.0
        %620 = vmatpush2.msra.mxu0 0.0
        %621 = vmatprep.subr.mxu0 0.0
        %622 = vmatpush2.msra.mxu0 0.0
        %623 = vmatprep.mubr.f32.mxu0 0.0
        %624 = vmatmul.mubr.f32.gmra.mxu0 %v554
        %v625 = vpop.f32.mrf.mxu0
        %v626 = vadd.f32 0.0, %v625
        %v627 = vpop.f32.mrf.mxu0
        %628 = vmatprep.mubr.f32.mxu0 0.0
        %629 = vmatmul.mubr.f32.gmra.mxu0 %v557
        %v630 = vpop.f32.mrf.mxu0
        %v631 = vadd.f32 0.0, %v630
        %v632 = vpop.f32.mrf.mxu0
        %633 = vdwg.mxu0
        %v635 = vsel %vm498, %v547, 0
        %v638 = vsel %vm498, %v548, 0
        %640 = vmatprep.subr.mxu0 0.0
        %641 = vmatpush1.msra.mxu0 0.0
        %642 = vmatprep.subr.mxu0 0.0
        %643 = vmatpush1.msra.mxu0 0.0
        %644 = vmatprep.subr.mxu0 0.0
        %645 = vmatpush1.msra.mxu0 0.0
        %646 = vmatprep.subr.mxu0 0.0
        %647 = vmatpush1.msra.mxu0 0.0
        %648 = vmatprep.subr.mxu0 0.0
        %649 = vmatpush1.msra.mxu0 0.0
        %650 = vmatprep.subr.mxu0 0.0
        %651 = vmatpush1.msra.mxu0 0.0
        %652 = vmatprep.subr.mxu0 0.0
        %653 = vmatpush1.msra.mxu0 0.0
        %654 = vmatprep.subr.mxu0 0.0
        %655 = vmatpush1.msra.mxu0 0.0
        %656 = vmatprep.subr.mxu0 0.0
        %657 = vmatpush1.msra.mxu0 0.0
        %658 = vmatprep.subr.mxu0 0.0
        %659 = vmatpush1.msra.mxu0 0.0
        %660 = vmatprep.subr.mxu0 0.0
        %661 = vmatpush1.msra.mxu0 0.0
        %662 = vmatprep.subr.mxu0 0.0
        %663 = vmatpush1.msra.mxu0 0.0
        %664 = vmatprep.subr.mxu0 0.0
        %665 = vmatpush1.msra.mxu0 0.0
        %666 = vmatprep.subr.mxu0 0.0
        %667 = vmatpush1.msra.mxu0 0.0
        %668 = vmatprep.subr.mxu0 0.0
        %669 = vmatpush1.msra.mxu0 %v546
        %670 = vmatprep.subr.mxu0 0.0
        %671 = vmatpush1.msra.mxu0 %v545
        %672 = vmatprep.subr.mxu0 0.0
        %673 = vmatpush2.msra.mxu0 0.0
        %674 = vmatprep.subr.mxu0 0.0
        %675 = vmatpush2.msra.mxu0 0.0
        %676 = vmatprep.subr.mxu0 0.0
        %677 = vmatpush2.msra.mxu0 0.0
        %678 = vmatprep.subr.mxu0 0.0
        %679 = vmatpush2.msra.mxu0 0.0
        %680 = vmatprep.subr.mxu0 0.0
        %681 = vmatpush2.msra.mxu0 0.0
        %682 = vmatprep.subr.mxu0 0.0
        %683 = vmatpush2.msra.mxu0 0.0
        %684 = vmatprep.subr.mxu0 0.0
        %685 = vmatpush2.msra.mxu0 0.0
        %686 = vmatprep.subr.mxu0 0.0
        %687 = vmatpush2.msra.mxu0 0.0
        %688 = vmatprep.subr.mxu0 0.0
        %689 = vmatpush2.msra.mxu0 0.0
        %690 = vmatprep.subr.mxu0 0.0
        %691 = vmatpush2.msra.mxu0 0.0
        %692 = vmatprep.subr.mxu0 0.0
        %693 = vmatpush2.msra.mxu0 0.0
        %694 = vmatprep.subr.mxu0 0.0
        %695 = vmatpush2.msra.mxu0 0.0
        %696 = vmatprep.subr.mxu0 0.0
        %697 = vmatpush2.msra.mxu0 0.0
        %698 = vmatprep.subr.mxu0 0.0
        %699 = vmatpush2.msra.mxu0 0.0
        %700 = vmatprep.subr.mxu0 0.0
        %701 = vmatpush2.msra.mxu0 0.0
        %702 = vmatprep.subr.mxu0 0.0
        %703 = vmatpush2.msra.mxu0 0.0
        %704 = vmatprep.mubr.f32.mxu0 0.0
        %705 = vmatmul.mubr.f32.gmra.mxu0 %v635
        %v706 = vpop.f32.mrf.mxu0
        %v707 = vadd.f32 %v626, %v706
        %v708 = vpop.f32.mrf.mxu0
        %709 = vmatprep.mubr.f32.mxu0 0.0
        %710 = vmatmul.mubr.f32.gmra.mxu0 %v638
        %v711 = vpop.f32.mrf.mxu0
        %v712 = vadd.f32 %v631, %v711
        %v713 = vpop.f32.mrf.mxu0
        %714 = vdwg.mxu0
        %v715 = vsel %vm498, %v707, 0.0
        %716 = vadd.xlane.f32.xlu0 %v715
        %v717 = vpop.xlane.xlu0 %716
        %v718 = vsel %vm498, %v712, 0.0
        %719 = vadd.xlane.f32.xlu0 %v718
        %v720 = vpop.xlane.xlu0 %719
        %v721 = vmul.f32 %v707, %v707
        %v722 = vmul.f32 %v712, %v712
        %v723 = vsel %vm498, %v721, 0.0
        %724 = vadd.xlane.f32.xlu0 %v723
        %v725 = vpop.xlane.xlu0 %724
        %v726 = vsel %vm498, %v722, 0.0
        %727 = vadd.xlane.f32.xlu0 %v726
        %v728 = vpop.xlane.xlu0 %727
        %v729 = vmul.f32 %v717, 0.0625
        %v730 = vmul.f32 %v720, 0.0625
        %v731 = vmul.f32 %v725, 0.0625
        %v732 = vmul.f32 %v728, 0.0625
        %v733 = vmul.f32 %v729, %v729
        %v734 = vmul.f32 %v730, %v730
        %v735 = vsub.f32 %v731, %v733
        %v736 = vsub.f32 %v732, %v734
        %v737 = vsub.f32 %v707, %v729
        %v738 = vsub.f32 %v712, %v730
        %v739 = vadd.f32 %v735, 1e-05
        %v740 = vadd.f32 %v736, 1e-05
        %v741 = vrsqrt.pop %v739
        %v742 = vrsqrt.pop %v740
        %v743 = vmul.f32 %v737, %v741
        %v744 = vmul.f32 %v738, %v742
        %v745 = vmul.f32 %v743, 0.5
        %v746 = vmul.f32 %v744, 0.5
        %v747 = vmul.f32 %v743, %v743
        %v748 = vmul.f32 %v744, %v744
        %v749 = vmul.f32 %v747, %v743
        %v750 = vmul.f32 %v748, %v744
        %v751 = vmul.f32 %v749, 0.044715
        %v752 = vmul.f32 %v750, 0.044715
        %v753 = vadd.f32 %v743, %v751
        %v754 = vadd.f32 %v744, %v752
        %v755 = vmul.f32 %v753, 0.7978846
        %v756 = vmul.f32 %v754, 0.7978846
        %v757 = vtanh.pop %v755
        %v758 = vtanh.pop %v756
        %v759 = vadd.f32 %v757, 1.0
        %v760 = vadd.f32 %v758, 1.0
        %v761 = vmul.f32 %v745, %v759
        %v762 = vmul.f32 %v746, %v760
        %763 = vst.msk [vmem:[%s272] sm:$0xff] %vm498, %v761
        %764 = vst.msk [vmem:[%s272 + $0x8] sm:$0xff] %vm498, %v762
        %s765 = sand.u32 %s165, 1
        %s766 = scalar_lea.sflag [#allocation4], %s765
        %s767 = sand.u32 %s165, 1
        %s768 = smul.addr %s767, 16
        %s769 = scalar_lea.vmem [#allocation5], %s768
        // Predicated region
        $region49: #{tpu_custom_call.1} parent=43 // pred_check
          %p770 = pneg %p175
        $region50: #{tpu_custom_call.1} parent=43 // pred_check_branch
          %772 = sbr.rel (%p770) target = $region52
        $region51: #{tpu_custom_call.1} parent=43 // pred_region
          %s774 = ssub.s32 256, 256
          %775 = vsyncadd %s766, %s774
          %s776 = smul.addr %s21, 2
          %s777 = smul.addr %s776, 128
          %s778 = scalar_lea.hbm %s6, %s777
          %s779 = sshll.u32 %s769, 4
          %s780 = int_to_ptr.vmem [resolvable:$true] %s779
          %785 = dma.vmem_to_hbm [thread:$0]  %s780, 256, %s778, %s766, 128, 128, 8
        $region52: #{tpu_custom_call.1} parent=43 // pred_fallthru
          _
      $region44: #{tpu_custom_call.1} parent=5 // pred_fallthru
        _
      %p786 = scmp.le.s32.totalorder 2, %s16
      // Predicated region
      $region53: #{tpu_custom_call.1} parent=5 // pred_check
        %p787 = pneg %p786
      $region54: #{tpu_custom_call.1} parent=5 // pred_check_branch
        %789 = sbr.rel (%p787) target = $region56
      $region55: #{tpu_custom_call.1} parent=5 // pred_region
        %s790 = ssub.s32 %s16, 2
        // Predicated region
        $region57: #{tpu_custom_call.1} parent=55 // pred_check
          %p791 = pneg %p181
        $region58: #{tpu_custom_call.1} parent=55 // pred_check_branch
          %793 = sbr.rel (%p791) target = $region60
        $region59: #{tpu_custom_call.1} parent=55 // pred_region
          %s794 = sand.u32 %s166, 1
          %s795 = scalar_lea.sflag [#allocation4], %s794
          %s796 = sand.u32 %s166, 1
          %s797 = smul.addr %s796, 16
          %s798 = scalar_lea.vmem [#allocation5], %s797
          %799 = dma.done %s795, 256
        $region60: #{tpu_custom_call.1} parent=55 // pred_fallthru
          _
      $region56: #{tpu_custom_call.1} parent=5 // pred_fallthru
        _
    $region6: #{tpu_custom_call.1} parent=1 // loop_footer
      %s20 = sadd.s32 1, %s16
    $region7: #{tpu_custom_call.1} parent=1 // loop_footer_branch
      %15 = sbr.rel target = $region3
    $region8: #{tpu_custom_call.1} parent=1 // loop_exit
      _
    %800 = vsyncpa [#allocation3], 1
    %s801 = scalar_lea.sflag [#allocation3], 1
    %802 = vsyncpa %s801, 1
    %803 = vsyncpa [#allocation4], 1
    %s804 = scalar_lea.sflag [#allocation4], 1
    %805 = vsyncpa %s804, 1

</llo_original>
